<compile_context>
chip_gen: v7x
topology: tpu7x:2x2x1
jax: 0.10.0
libtpu: 0.0.40
codegen_flags: <defaults>
</compile_context>

<pallas_src>
import functools

import jax
import jax.numpy as jnp
from jax.experimental import pallas as pl
from jax.experimental.pallas import tpu as pltpu

LANE = 128  # vreg lane width; hidden / action dims are padded to this once, offline


def _ceil_to(n, m):
    return ((n + m - 1) // m) * m


def dqn_kernel(x_ref, w1_ref, b1_ref, w2_ref, b2_ref, o_ref):
    # x_ref : (tb, S)   f32  — raw states, cast to bf16 here (free VPU work)
    # w1_ref: (S,  Hp)  bf16 — lane-padded first-layer weights
    # b1_ref: (1,  Hp)  f32  — first-layer bias (padded cols are 0)
    # w2_ref: (Hp, Ap)  bf16 — lane-padded second-layer weights (padded rows are 0)
    # b2_ref: (1,  Ap)  f32  — second-layer bias (padded cols are 0)
    # o_ref : (tb, Ap)  f32  — Q-values in columns [:A]
    x = x_ref[...].astype(w1_ref.dtype)
    h = jnp.dot(x, w1_ref[...], preferred_element_type=jnp.float32)
    h = jnp.maximum(h + b1_ref[...], 0.0)          # bias add + ReLU in f32 on the VPU
    y = jnp.dot(h.astype(w2_ref.dtype), w2_ref[...],
                preferred_element_type=jnp.float32)
    o_ref[...] = y + b2_ref[...]


def pack_params(w1, b1, w2, b2, dtype=jnp.bfloat16):
    """One-time packing: lane-pad H and A to 128 and cast weights to bf16.

    Padded weight rows/cols are zero (contribute nothing); biases stay f32.
    Returns (w1p (S,Hp) bf16, b1p (1,Hp) f32, w2p (Hp,Ap) bf16, b2p (1,Ap) f32).
    """
    S, H = w1.shape
    _, A = w2.shape
    Hp = _ceil_to(H, LANE)
    Ap = _ceil_to(A, LANE)
    w1p = jnp.zeros((S, Hp), jnp.float32).at[:, :H].set(w1).astype(dtype)
    b1p = jnp.zeros((1, Hp), jnp.float32).at[0, :H].set(b1)
    w2p = jnp.zeros((Hp, Ap), jnp.float32).at[:H, :A].set(w2).astype(dtype)
    b2p = jnp.zeros((1, Ap), jnp.float32).at[0, :A].set(b2)
    return w1p, b1p, w2p, b2p


@functools.partial(jax.jit, static_argnames=("num_actions", "tb"))
def dqn_forward(x, w1p, b1p, w2p, b2p, *, num_actions, tb=None):
    """y = relu(x @ W1 + b1) @ W2 + b2, shape (B, num_actions), f32."""
    B, S = x.shape
    _, Hp = w1p.shape
    _, Ap = w2p.shape

    if tb is None or tb >= B:
        # Single grid step (the right choice for v5e/v6e and for small batches).
        tb_eff, Bp, xb = B, B, x
    else:
        # Batch-tiled path for large replay batches; keep tiles big (256–512).
        assert tb % 8 == 0, "batch tile must be a multiple of 8"
        tb_eff = tb
        Bp = _ceil_to(B, tb_eff)
        xb = jnp.pad(x, ((0, Bp - B), (0, 0))) if Bp != B else x

    grid = (Bp // tb_eff,)
    out = pl.pallas_call(
        dqn_kernel,
        out_shape=jax.ShapeDtypeStruct((Bp, Ap), jnp.float32),
        grid_spec=pltpu.PrefetchScalarGridSpec(
            num_scalar_prefetch=0,
            grid=grid,
            in_specs=[
                pl.BlockSpec((tb_eff, S), lambda i: (i, 0)),  # states (full S is legal)
                pl.BlockSpec((S, Hp), lambda i: (0, 0)),      # W1, resident
                pl.BlockSpec((1, Hp), lambda i: (0, 0)),      # b1, resident
                pl.BlockSpec((Hp, Ap), lambda i: (0, 0)),     # W2, resident
                pl.BlockSpec((1, Ap), lambda i: (0, 0)),      # b2, resident
            ],
            out_specs=pl.BlockSpec((tb_eff, Ap), lambda i: (i, 0)),
        ),
        compiler_params=pltpu.CompilerParams(
            dimension_semantics=("parallel",),  # batch tiles are independent
        ),
    )(xb, w1p, b1p, w2p, b2p)
    return out[:B, :num_actions]


def init_params(key, total_states, neural_layer, total_actions):
    # Same shapes as the nn.Linear weights, stored transposed so the kernel
    # computes x @ W directly.
    k1, k2, k3, k4 = jax.random.split(key, 4)
    bound1 = 1.0 / jnp.sqrt(total_states)
    bound2 = 1.0 / jnp.sqrt(neural_layer)
    w1 = jax.random.uniform(k1, (total_states, neural_layer), jnp.float32, -bound1, bound1)
    b1 = jax.random.uniform(k2, (neural_layer,), jnp.float32, -bound1, bound1)
    w2 = jax.random.uniform(k3, (neural_layer, total_actions), jnp.float32, -bound2, bound2)
    b2 = jax.random.uniform(k4, (total_actions,), jnp.float32, -bound2, bound2)
    return w1, b1, w2, b2


if __name__ == "__main__":
    # config['network'] equivalents — small, deterministic demo shapes.
    total_states = 16     # state_size
    neural_layer = 32     # hidden width
    total_actions = 4     # action_size
    batch = 16

    key = jax.random.PRNGKey(0)
    kx, kp = jax.random.split(key)
    x = jax.random.normal(kx, (batch, total_states), dtype=jnp.float32)
    w1, b1, w2, b2 = init_params(kp, total_states, neural_layer, total_actions)

    w1p, b1p, w2p, b2p = pack_params(w1, b1, w2, b2, dtype=jnp.bfloat16)
    out = dqn_forward(x, w1p, b1p, w2p, b2p, num_actions=total_actions)
    out = jax.block_until_ready(out)
    assert out.shape == (batch, total_actions)

    # Check 1 (tight): pure-JAX reference with the SAME quantization the kernel
    # uses (bf16 x / weights / hidden, f32 accumulation, f32 biases).
    f32, bf16 = jnp.float32, jnp.bfloat16
    xq = x.astype(bf16).astype(f32)
    w1q, w2q = w1.astype(bf16).astype(f32), w2.astype(bf16).astype(f32)
    h_ref = jnp.maximum(xq @ w1q + b1, 0.0)
    ref_q = h_ref.astype(bf16).astype(f32) @ w2q + b2
    assert jnp.allclose(out, ref_q, atol=1e-2, rtol=1e-2)

    # Check 2 (loose): original full-f32 module semantics — only bf16 rounding of
    # the matmul operands separates the two (biases are now exact f32).
    ref = jnp.maximum(x @ w1 + b1, 0.0) @ w2 + b2
    assert jnp.allclose(out, ref, atol=1e-1, rtol=1e-1)

    print("KERNEL_OK")
</pallas_src>

<mosaic_0001>
module attributes {stable_mosaic.version = 11 : i64} {
  func.func @dqn_kernel(%arg0: i32, %arg1: memref<16x16xf32, #tpu.memory_space<vmem>>, %arg2: memref<16x128xbf16, #tpu.memory_space<vmem>>, %arg3: memref<1x128xf32, #tpu.memory_space<vmem>>, %arg4: memref<128x128xbf16, #tpu.memory_space<vmem>>, %arg5: memref<1x128xf32, #tpu.memory_space<vmem>>, %arg6: memref<16x128xf32, #tpu.memory_space<vmem>>) attributes {dimension_semantics = [#tpu.dimension_semantics<parallel>], iteration_bounds = array<i64: 1>, scalar_prefetch = 0 : i64, scratch_operands = 0 : i64, tpu.core_type = #tpu.core_type<tc>, window_params = [{transform_indices = @transform_0, window_bounds = array<i64: 16, 16>}, {pipeline_mode = #tpu.pipeline_mode<synchronous>, transform_indices = @transform_1, window_bounds = array<i64: 16, 128>}, {pipeline_mode = #tpu.pipeline_mode<synchronous>, transform_indices = @transform_2, window_bounds = array<i64: 1, 128>}, {pipeline_mode = #tpu.pipeline_mode<synchronous>, transform_indices = @transform_3, window_bounds = array<i64: 128, 128>}, {pipeline_mode = #tpu.pipeline_mode<synchronous>, transform_indices = @transform_4, window_bounds = array<i64: 1, 128>}, {transform_indices = @transform_5, window_bounds = array<i64: 16, 128>}]} {
    %c0 = arith.constant 0 : index
    %c0_0 = arith.constant 0 : index
    %0 = vector.load %arg1[%c0, %c0_0] : memref<16x16xf32, #tpu.memory_space<vmem>>, vector<16x16xf32>
    %1 = arith.truncf %0 : vector<16x16xf32> to vector<16x16xbf16>
    %c0_1 = arith.constant 0 : index
    %c0_2 = arith.constant 0 : index
    %2 = vector.load %arg2[%c0_1, %c0_2] : memref<16x128xbf16, #tpu.memory_space<vmem>>, vector<16x128xbf16>
    %cst = arith.constant dense<0.000000e+00> : vector<16x128xf32>
    %3 = tpu.matmul %1, %2, %cst {dimension_numbers = #tpu.dot_dimension_numbers<[1], [0], [0], [1], [0, 0, 1, 1], [], []>} : vector<16x16xbf16>, vector<16x128xbf16>, vector<16x128xf32> -> vector<16x128xf32>
    %c0_3 = arith.constant 0 : index
    %c0_4 = arith.constant 0 : index
    %4 = vector.load %arg3[%c0_3, %c0_4] : memref<1x128xf32, #tpu.memory_space<vmem>>, vector<1x128xf32>
    %5 = vector.broadcast %4 : vector<1x128xf32> to vector<16x128xf32>
    %6 = arith.addf %3, %5 : vector<16x128xf32>
    %cst_5 = arith.constant 0.000000e+00 : f32
    %7 = vector.broadcast %cst_5 : f32 to vector<16x128xf32>
    %8 = arith.maximumf %6, %7 : vector<16x128xf32>
    %9 = arith.truncf %8 : vector<16x128xf32> to vector<16x128xbf16>
    %c0_6 = arith.constant 0 : index
    %c0_7 = arith.constant 0 : index
    %10 = vector.load %arg4[%c0_6, %c0_7] : memref<128x128xbf16, #tpu.memory_space<vmem>>, vector<128x128xbf16>
    %cst_8 = arith.constant dense<0.000000e+00> : vector<16x128xf32>
    %11 = tpu.matmul %9, %10, %cst_8 {dimension_numbers = #tpu.dot_dimension_numbers<[1], [0], [0], [1], [0, 0, 1, 1], [], []>} : vector<16x128xbf16>, vector<128x128xbf16>, vector<16x128xf32> -> vector<16x128xf32>
    %c0_9 = arith.constant 0 : index
    %c0_10 = arith.constant 0 : index
    %12 = vector.load %arg5[%c0_9, %c0_10] : memref<1x128xf32, #tpu.memory_space<vmem>>, vector<1x128xf32>
    %13 = vector.broadcast %12 : vector<1x128xf32> to vector<16x128xf32>
    %14 = arith.addf %11, %13 : vector<16x128xf32>
    %c0_11 = arith.constant 0 : index
    %c0_12 = arith.constant 0 : index
    %15 = vector.load %arg6[%c0_11, %c0_12] : memref<16x128xf32, #tpu.memory_space<vmem>>, vector<16x128xf32>
    tpu.vector_store %arg6[%c0_11, %c0_12], %14 {strides = array<i32>} : memref<16x128xf32, #tpu.memory_space<vmem>>, vector<16x128xf32>,
    return
  }
  func.func @transform_0(%arg0: i32) -> (i32, i32) {
    %c0_i32 = arith.constant 0 : i32
    %c0_i32_0 = arith.constant 0 : i32
    return %arg0, %c0_i32 : i32, i32
  }
  func.func @transform_1(%arg0: i32) -> (i32, i32) {
    %c0_i32 = arith.constant 0 : i32
    %c0_i32_0 = arith.constant 0 : i32
    %c0_i32_1 = arith.constant 0 : i32
    return %c0_i32, %c0_i32_0 : i32, i32
  }
  func.func @transform_2(%arg0: i32) -> (i32, i32) {
    %c0_i32 = arith.constant 0 : i32
    %c0_i32_0 = arith.constant 0 : i32
    %c0_i32_1 = arith.constant 0 : i32
    return %c0_i32, %c0_i32_0 : i32, i32
  }
  func.func @transform_3(%arg0: i32) -> (i32, i32) {
    %c0_i32 = arith.constant 0 : i32
    %c0_i32_0 = arith.constant 0 : i32
    %c0_i32_1 = arith.constant 0 : i32
    return %c0_i32, %c0_i32_0 : i32, i32
  }
  func.func @transform_4(%arg0: i32) -> (i32, i32) {
    %c0_i32 = arith.constant 0 : i32
    %c0_i32_0 = arith.constant 0 : i32
    %c0_i32_1 = arith.constant 0 : i32
    return %c0_i32, %c0_i32_0 : i32, i32
  }
  func.func @transform_5(%arg0: i32) -> (i32, i32) {
    %c0_i32 = arith.constant 0 : i32
    %c0_i32_0 = arith.constant 0 : i32
    return %arg0, %c0_i32 : i32, i32
  }
}

</mosaic_0001>

<llo_original>
// kernel: dqn_forward.1
$region0: #{dqn_forward.1}
  #allocation0 [shape = 'u32[]', space=smem, size = 0x4, offset = 0x4, fixed_abs, tag = 'smem constant byte address 0x4 - core index']
  #allocation1 [shape = 'u32[144,128]{1,0:T(1,128)}', space=vmem, size = 0x12000, scoped, tag = 'internal scratch']
  %s0 = inlined_call_operand.hbm [shape: f32[16,16], index: 0, kind: input, shape index: {}]
  %s1 = inlined_call_operand.hbm [shape: bf16[16,128], index: 1, kind: input, shape index: {}]
  %s2 = inlined_call_operand.vmem [shape: f32[1,128], index: 2, kind: input, shape index: {}]
  %s3 = inlined_call_operand.hbm [shape: bf16[128,128], index: 3, kind: input, shape index: {}]
  %s4 = inlined_call_operand.vmem [shape: f32[1,128], index: 4, kind: input, shape index: {}]
  %s5 = inlined_call_operand.vmem [shape: f32[16,128], index: 5, kind: output, shape index: {}]
  %s6 = sld [smem:[#allocation0]]
  $region42: #{dqn_forward.1} parent=0
    _
  %s8 = ssub.s32 1, %s6
  %s9 = scalar_select 0, %s8, %s6
  $region1: #{dqn_forward.1} parent=0
    #allocation2 [shape = 'u8[8192]{0}', space=vmem, size = 0x2000, scoped, tag = 'input window, operand 0, single buffered']
    #allocation3 [shape = 's32[1]{0}', space=sflag, size = 0x4, scoped, tag = 'scoped memory for dqn_forward.1']
    #allocation4 [shape = 'u8[4096]{0}', space=vmem, size = 0x1000, scoped, tag = 'input window, operand 1, single buffered']
    #allocation5 [shape = 's32[1]{0}', space=sflag, size = 0x4, scoped, tag = 'scoped memory for dqn_forward.1']
    #allocation6 [shape = 'u8[32768]{0}', space=vmem, size = 0x8000, scoped, tag = 'input window, operand 3, single buffered']
    %10 = vsyncpa [#allocation3], 0
    %11 = vsyncpa [#allocation5], 0
    // Predicated region
    $region2: #{dqn_forward.1} parent=1 // pred_check
      _
    $region3: #{dqn_forward.1} parent=1 // pred_check_branch
      %13 = sbr.rel (0) target = $region5
    $region4: #{dqn_forward.1} parent=1 // pred_region
      %s15 = ssub.s32 256, 256
      %16 = vsyncadd [#allocation3], %s15
      %s17 = sshll.u32 [#allocation2], 4
      %s18 = int_to_ptr.vmem [resolvable:$true] %s17
      %23 = dma.hbm_to_vmem [thread:$0]  %s0, 256, %s18, [#allocation3], 128, 128, 8
    $region5: #{dqn_forward.1} parent=1 // pred_fallthru
      _
    // Predicated region
    $region6: #{dqn_forward.1} parent=1 // pred_check
      _
    $region7: #{dqn_forward.1} parent=1 // pred_check_branch
      %25 = sbr.rel (0) target = $region9
    $region8: #{dqn_forward.1} parent=1 // pred_region
      %s27 = ssub.s32 128, 128
      %28 = vsyncadd [#allocation5], %s27
      %s29 = sshll.u32 [#allocation4], 4
      %s30 = int_to_ptr.vmem [resolvable:$true] %s29
      %35 = dma.hbm_to_vmem [thread:$0]  %s1, 128, %s30, [#allocation5], 64, 64, 4
    $region9: #{dqn_forward.1} parent=1 // pred_fallthru
      _
    // Predicated region
    $region10: #{dqn_forward.1} parent=1 // pred_check
      _
    $region11: #{dqn_forward.1} parent=1 // pred_check_branch
      %37 = sbr.rel (0) target = $region13
    $region12: #{dqn_forward.1} parent=1 // pred_region
      _
    $region13: #{dqn_forward.1} parent=1 // pred_fallthru
      _
    // Predicated region
    $region14: #{dqn_forward.1} parent=1 // pred_check
      _
    $region15: #{dqn_forward.1} parent=1 // pred_check_branch
      %39 = sbr.rel (0) target = $region17
    $region16: #{dqn_forward.1} parent=1 // pred_region
      %s41 = ssub.s32 1024, 1024
      %42 = vsyncadd [#allocation5], %s41
      %s43 = sshll.u32 [#allocation6], 4
      %s44 = int_to_ptr.vmem [resolvable:$true] %s43
      %49 = dma.hbm_to_vmem [thread:$0]  %s3, 1024, %s44, [#allocation5], 64, 64, 4
    $region17: #{dqn_forward.1} parent=1 // pred_fallthru
      _
    // Predicated region
    $region18: #{dqn_forward.1} parent=1 // pred_check
      _
    $region19: #{dqn_forward.1} parent=1 // pred_check_branch
      %51 = sbr.rel (0) target = $region21
    $region20: #{dqn_forward.1} parent=1 // pred_region
      _
    $region21: #{dqn_forward.1} parent=1 // pred_fallthru
      _
    // Predicated region
    $region22: #{dqn_forward.1} parent=1 // pred_check
      _
    $region23: #{dqn_forward.1} parent=1 // pred_check_branch
      %53 = sbr.rel (0) target = $region25
    $region24: #{dqn_forward.1} parent=1 // pred_region
      %54 = dma.done [#allocation3], 256
    $region25: #{dqn_forward.1} parent=1 // pred_fallthru
      _
    // Predicated region
    $region26: #{dqn_forward.1} parent=1 // pred_check
      _
    $region27: #{dqn_forward.1} parent=1 // pred_check_branch
      %56 = sbr.rel (0) target = $region29
    $region28: #{dqn_forward.1} parent=1 // pred_region
      %57 = dma.done [#allocation5], 128
    $region29: #{dqn_forward.1} parent=1 // pred_fallthru
      _
    // Predicated region
    $region30: #{dqn_forward.1} parent=1 // pred_check
      _
    $region31: #{dqn_forward.1} parent=1 // pred_check_branch
      %59 = sbr.rel (0) target = $region33
    $region32: #{dqn_forward.1} parent=1 // pred_region
      %60 = dma.done [#allocation5], 1024
    $region33: #{dqn_forward.1} parent=1 // pred_fallthru
      _
    %v62 = vld [vmem:[#allocation2] sm:$0xff]
    %v63 = vld [vmem:[#allocation2 + $0x8] sm:$0xff]
    %v64 = vpack.c.bf16 %v63, %v62
    %v65 = vld [vmem:[#allocation4] sm:$0xf]
    %v66 = vld [vmem:[#allocation4 + $0x4] sm:$0xf]
    %v67 = vld [vmem:[%s2] sm:$0x1]
    %v69 = vlaneseq
    %v70 = vshrl.u32 %v69, 7
    %v71 = vsub.s32 0, %v70
    %v72 = vrot.slane %v67, %v71
    %v76 = vunpack.c.l.b16 %v65
    %v77 = vunpack.c.l.b16 %v66
    %v78 = vpack.c.b16 %v77, %v76
    %vm80 = vcmask 130048
    %v82 = vsel %vm80, %v64, 0
    %84 = vmatprep.subr.bf16.mxu0 0
    %85 = vmatpush1.bf16.msra.mxu0 %v78
    %86 = vmatprep.subr.bf16.mxu0 0
    %87 = vmatpush1.bf16.msra.mxu0 0
    %88 = vmatprep.subr.bf16.mxu0 0
    %89 = vmatpush1.bf16.msra.mxu0 0
    %90 = vmatprep.subr.bf16.mxu0 0
    %91 = vmatpush1.bf16.msra.mxu0 0
    %92 = vmatprep.subr.bf16.mxu0 0
    %93 = vmatpush1.bf16.msra.mxu0 0
    %94 = vmatprep.subr.bf16.mxu0 0
    %95 = vmatpush1.bf16.msra.mxu0 0
    %96 = vmatprep.subr.bf16.mxu0 0
    %97 = vmatpush1.bf16.msra.mxu0 0
    %98 = vmatprep.subr.bf16.mxu0 0
    %99 = vmatpush1.bf16.msra.mxu0 0
    %100 = vmatprep.subr.bf16.mxu0 0
    %101 = vmatpush1.bf16.msra.mxu0 0
    %102 = vmatprep.subr.bf16.mxu0 0
    %103 = vmatpush1.bf16.msra.mxu0 0
    %104 = vmatprep.subr.bf16.mxu0 0
    %105 = vmatpush1.bf16.msra.mxu0 0
    %106 = vmatprep.subr.bf16.mxu0 0
    %107 = vmatpush1.bf16.msra.mxu0 0
    %108 = vmatprep.subr.bf16.mxu0 0
    %109 = vmatpush1.bf16.msra.mxu0 0
    %110 = vmatprep.subr.bf16.mxu0 0
    %111 = vmatpush1.bf16.msra.mxu0 0
    %112 = vmatprep.subr.bf16.mxu0 0
    %113 = vmatpush1.bf16.msra.mxu0 0
    %114 = vmatprep.subr.bf16.mxu0 0
    %115 = vmatpush1.bf16.msra.mxu0 0
    %116 = vmatprep.mubr.bf16.mxu0 0
    %117 = vmatmul.mubr.bf16.gmra.mrb[0].mxu0 %v82
    %v118 = vpop.f32.mrb[0].mxu0
    %v119 = vadd.f32 %v72, %v118
    %v120 = vpop.f32.mrb[0].mxu0
    %v121 = vpop.f32.mrb[0].mxu0
    %v122 = vadd.f32 %v72, %v121
    %v123 = vpop.f32.mrb[0].mxu0
    %124 = vdwg.mxu0
    %v125 = vmax.f32 %v119, 0.0
    %v126 = vmax.f32 %v122, 0.0
    %v127 = vpack.c.bf16 %v126, %v125
    %v128 = vld [vmem:[#allocation6] sm:$0xf]
    %v129 = vld [vmem:[#allocation6 + $0x4] sm:$0xf]
    %v130 = vld [vmem:[#allocation6 + $0x8] sm:$0xf]
    %v131 = vld [vmem:[#allocation6 + $0xc] sm:$0xf]
    %v132 = vld [vmem:[#allocation6 + $0x10] sm:$0xf]
    %v133 = vld [vmem:[#allocation6 + $0x14] sm:$0xf]
    %v134 = vld [vmem:[#allocation6 + $0x18] sm:$0xf]
    %v135 = vld [vmem:[#allocation6 + $0x1c] sm:$0xf]
    %v136 = vld [vmem:[#allocation6 + $0x20] sm:$0xf]
    %v137 = vld [vmem:[#allocation6 + $0x24] sm:$0xf]
    %v138 = vld [vmem:[#allocation6 + $0x28] sm:$0xf]
    %v139 = vld [vmem:[#allocation6 + $0x2c] sm:$0xf]
    %v140 = vld [vmem:[#allocation6 + $0x30] sm:$0xf]
    %v141 = vld [vmem:[#allocation6 + $0x34] sm:$0xf]
    %v142 = vld [vmem:[#allocation6 + $0x38] sm:$0xf]
    %v143 = vld [vmem:[#allocation6 + $0x3c] sm:$0xf]
    %v144 = vld [vmem:[%s4] sm:$0x1]
    %v146 = vlaneseq
    %v147 = vshrl.u32 %v146, 7
    %v148 = vsub.s32 0, %v147
    %v149 = vrot.slane %v144, %v148
    %v167 = vunpack.c.l.b16 %v128
    %v168 = vunpack.c.l.b16 %v129
    %v169 = vunpack.c.l.b16 %v130
    %v170 = vunpack.c.l.b16 %v131
    %v171 = vunpack.c.l.b16 %v132
    %v172 = vunpack.c.l.b16 %v133
    %v173 = vunpack.c.l.b16 %v134
    %v174 = vunpack.c.l.b16 %v135
    %v175 = vunpack.c.l.b16 %v136
    %v176 = vunpack.c.l.b16 %v137
    %v177 = vunpack.c.l.b16 %v138
    %v178 = vunpack.c.l.b16 %v139
    %v179 = vunpack.c.l.b16 %v140
    %v180 = vunpack.c.l.b16 %v141
    %v181 = vunpack.c.l.b16 %v142
    %v182 = vunpack.c.l.b16 %v143
    %v183 = vpack.c.b16 %v168, %v167
    %v184 = vpack.c.b16 %v170, %v169
    %v185 = vpack.c.b16 %v172, %v171
    %v186 = vpack.c.b16 %v174, %v173
    %v187 = vpack.c.b16 %v176, %v175
    %v188 = vpack.c.b16 %v178, %v177
    %v189 = vpack.c.b16 %v180, %v179
    %v190 = vpack.c.b16 %v182, %v181
    %199 = vmatprep.subr.bf16.mxu0 0
    %200 = vmatpush1.bf16.msra.mxu0 %v183
    %201 = vmatprep.subr.bf16.mxu0 0
    %202 = vmatpush1.bf16.msra.mxu0 %v184
    %203 = vmatprep.subr.bf16.mxu0 0
    %204 = vmatpush1.bf16.msra.mxu0 %v185
    %205 = vmatprep.subr.bf16.mxu0 0
    %206 = vmatpush1.bf16.msra.mxu0 %v186
    %207 = vmatprep.subr.bf16.mxu0 0
    %208 = vmatpush1.bf16.msra.mxu0 %v187
    %209 = vmatprep.subr.bf16.mxu0 0
    %210 = vmatpush1.bf16.msra.mxu0 %v188
    %211 = vmatprep.subr.bf16.mxu0 0
    %212 = vmatpush1.bf16.msra.mxu0 %v189
    %213 = vmatprep.subr.bf16.mxu0 0
    %214 = vmatpush1.bf16.msra.mxu0 %v190
    %215 = vmatprep.subr.bf16.mxu0 0
    %216 = vmatpush1.bf16.msra.mxu0 0
    %217 = vmatprep.subr.bf16.mxu0 0
    %218 = vmatpush1.bf16.msra.mxu0 0
    %219 = vmatprep.subr.bf16.mxu0 0
    %220 = vmatpush1.bf16.msra.mxu0 0
    %221 = vmatprep.subr.bf16.mxu0 0
    %222 = vmatpush1.bf16.msra.mxu0 0
    %223 = vmatprep.subr.bf16.mxu0 0
    %224 = vmatpush1.bf16.msra.mxu0 0
    %225 = vmatprep.subr.bf16.mxu0 0
    %226 = vmatpush1.bf16.msra.mxu0 0
    %227 = vmatprep.subr.bf16.mxu0 0
    %228 = vmatpush1.bf16.msra.mxu0 0
    %229 = vmatprep.subr.bf16.mxu0 0
    %230 = vmatpush1.bf16.msra.mxu0 0
    %231 = vmatprep.mubr.bf16.mxu0 0
    %232 = vmatmul.mubr.bf16.gmra.mrb[0].mxu0 %v127
    %v233 = vpop.f32.mrb[0].mxu0
    %v234 = vadd.f32 %v149, %v233
    %v235 = vpop.f32.mrb[0].mxu0
    %v236 = vpop.f32.mrb[0].mxu0
    %v237 = vadd.f32 %v149, %v236
    %v238 = vpop.f32.mrb[0].mxu0
    %239 = vdwg.mxu0
    %240 = vst [vmem:[%s5] sm:$0xff] %v234
    %241 = vst [vmem:[%s5 + $0x8] sm:$0xff] %v237
    // Predicated region
    $region34: #{dqn_forward.1} parent=1 // pred_check
      _
    $region35: #{dqn_forward.1} parent=1 // pred_check_branch
      %243 = sbr.rel (0) target = $region37
    $region36: #{dqn_forward.1} parent=1 // pred_region
      _
    $region37: #{dqn_forward.1} parent=1 // pred_fallthru
      _
    // Predicated region
    $region38: #{dqn_forward.1} parent=1 // pred_check
      _
    $region39: #{dqn_forward.1} parent=1 // pred_check_branch
      %245 = sbr.rel (0) target = $region41
    $region40: #{dqn_forward.1} parent=1 // pred_region
      _
    $region41: #{dqn_forward.1} parent=1 // pred_fallthru
      _
    %246 = vsyncpa [#allocation3], 1
    %247 = vsyncpa [#allocation5], 1

</llo_original>
